<compile_context>
chip_gen: v5e
topology: v5e:2x2
jax: 0.10.0
libtpu: 0.0.40
codegen_flags: <defaults>
</compile_context>

<pallas_src>
import jax
import jax.numpy as jnp
from jax.experimental import pallas as pl
from jax.experimental.pallas import tpu as pltpu


_PIX_PER_ROW = 128  # pixels per streamed input row -> input lane width is 128*C


def _deinterleave_kernel(x_ref, o_ref, xt_ref):
    """One tile of the NHWC -> NCHW permute.

    x_ref : (1, tR, 128*C)  tR rows of 128 pixels, channels interleaved along lanes
                            (fully lane-dense streaming DMA).
    o_ref : (1, C, tR, 128) per-channel pixel planes (lane-dense, unmasked stores).
    xt_ref: (128*C, tR)     VMEM scratch holding the transposed tile.
    """
    C = o_ref.shape[1]
    # Dense 2-D transpose: moves the channel interleaving from the lane dim to the
    # sublane dim, where stride-C extraction is a native strided load.
    xt_ref[...] = jnp.transpose(x_ref[0], (1, 0))
    # C is tiny (3/4) and static -> unrolled loop of C stride-C sublane reads plus a
    # dense transpose back; all operands stay lane-dense.
    for c in range(C):
        plane_t = xt_ref[pl.ds(c, _PIX_PER_ROW, stride=C), :]   # (128, tR)
        o_ref[0, c] = jnp.transpose(plane_t, (1, 0))             # (tR, 128)


def _vmem_limit_bytes() -> int:
    """Generation-aware scoped-VMEM limit (v7x: ~40 MiB, v5e/v6e: ~80 MiB)."""
    try:
        phys = int(pltpu.get_tpu_info().vmem_capacity_bytes)
    except Exception:
        phys = 64 * 1024 * 1024  # conservative: v7x per-TensorCore VMEM
    return min(phys * 5 // 8, 100 * 1024 * 1024)


def _pick_row_tile(n_rows: int, C: int, itemsize: int, vmem_limit: int) -> int:
    """Rows (of 128 pixels) per grid step.

    ~5 tile-sized buffers are live at once (2x input, 2x output, 1x transpose
    scratch); keep them around 20 MiB total (well under the scoped limit on every
    generation, leaving headroom for compiler temporaries), which still gives
    multi-MiB DMAs per step so the ~0.35 us/step overhead is negligible.
    """
    row_bytes = _PIX_PER_ROW * C * itemsize
    budget = min(vmem_limit // 2, 20 * 1024 * 1024)
    max_rows = max(1, budget // (5 * row_bytes))
    t = min(n_rows, max_rows)
    # Prefer >=2 grid steps: pipeline overlap + both TensorCores on v7x.
    if t >= n_rows and n_rows >= 16:
        t = -(-n_rows // 2)
    if t >= 128:
        t = (t // 128) * 128      # lane-friendly minor dim for the scratch
    elif t >= 8:
        t = (t // 8) * 8          # sublane-aligned block
    else:
        t = n_rows                # tiny input: one full (always-legal) block
    return max(1, min(t, n_rows))


def _bhwc_to_bchw(x: jax.Array) -> jax.Array:
    """Pallas-backed NHWC -> NCHW permute. x: (B, H, W, C) -> (B, C, H, W)."""
    B, H, W, C = x.shape
    hw = H * W

    if C == 1:
        # NHWC with C=1 has the same memory layout as NCHW: pure metadata.
        return x.reshape(B, 1, H, W)

    pallas_ok = (C <= 8) and (hw % _PIX_PER_ROW == 0) and (x.dtype.itemsize == 4)
    if not pallas_ok:
        # TODO(synk): add a ragged/masked Pallas path for hw % 128 != 0 and a
        # bitcast (uint8 x C=4 -> uint32) VPU fast path for sub-32-bit dtypes.
        return jnp.transpose(x, (0, 3, 1, 2))

    n_rows = hw // _PIX_PER_ROW
    lane = _PIX_PER_ROW * C
    vmem_limit = _vmem_limit_bytes()
    tR = _pick_row_tile(n_rows, C, x.dtype.itemsize, vmem_limit)
    n_tiles = pl.cdiv(n_rows, tR)

    # Free, contiguous reshape: each row = 128 pixels (all channels interleaved),
    # so the streamed input block is fully lane-dense (minor dim = 128*C).
    x_rows = x.reshape(B, n_rows, lane)

    out = pl.pallas_call(
        _deinterleave_kernel,
        out_shape=jax.ShapeDtypeStruct((B, C, n_rows, _PIX_PER_ROW), x.dtype),
        grid_spec=pltpu.PrefetchScalarGridSpec(
            num_scalar_prefetch=0,
            grid=(B, n_tiles),
            in_specs=[pl.BlockSpec((1, tR, lane), lambda b, t: (b, t, 0))],
            out_specs=pl.BlockSpec(
                (1, C, tR, _PIX_PER_ROW), lambda b, t: (b, 0, t, 0)
            ),
            scratch_shapes=[pltpu.VMEM((lane, tR), x.dtype)],
        ),
        compiler_params=pltpu.CompilerParams(
            dimension_semantics=("parallel", "parallel"),
            vmem_limit_bytes=vmem_limit,
        ),
    )(x_rows)

    # Free, contiguous reshape back to 4-D NCHW.
    return out.reshape(B, C, H, W)


def image_to_tensor(image: jax.Array, keepdim: bool = True) -> jax.Array:
    """JAX/Pallas equivalent of kornia.utils.image.image_to_tensor."""
    ndim = image.ndim
    if ndim > 4 or ndim < 2:
        raise ValueError("Input size must be a two, three or four dimensional array")

    if ndim == 2:
        # (H, W) -> (1, H, W): pure unsqueeze, no data movement.
        tensor = image[None, :, :]
    elif ndim == 3:
        # (H, W, C) -> (C, H, W): kernel on a batch-of-1, then squeeze.
        tensor = _bhwc_to_bchw(image[None])[0]
    else:  # ndim == 4
        # (B, H, W, C) -> (B, C, H, W)
        tensor = _bhwc_to_bchw(image)
        keepdim = True  # reference forces keepdim=True for 4-D inputs

    return tensor if keepdim else tensor[None]


class ImageToTensor:
    """Mirror of kornia's ImageToTensor module (no parameters)."""

    def __init__(self, keepdim: bool = False) -> None:
        self.keepdim = keepdim

    def __call__(self, x: jax.Array) -> jax.Array:
        return image_to_tensor(x, keepdim=self.keepdim)


if __name__ == "__main__":
    key = jax.random.PRNGKey(0)
    k2, k3, k4, k5, k6 = jax.random.split(key, 5)
    x2 = jax.random.uniform(k2, (16, 16), dtype=jnp.float32)           # (H, W)
    x3 = jax.random.uniform(k3, (16, 16, 4), dtype=jnp.float32)        # (H, W, C)
    x4 = jax.random.uniform(k4, (2, 16, 16, 4), dtype=jnp.float32)     # (B, H, W, C)
    x5 = jax.random.uniform(k5, (1, 32, 128, 3), dtype=jnp.float32)    # multi-tile, C=3
    x6 = jax.random.uniform(k6, (1, 40, 128, 4), dtype=jnp.float32)    # ragged last tile

    mod = ImageToTensor(keepdim=False)

    y2 = jax.block_until_ready(mod(x2))   # -> (1, 1, 16, 16)
    y3 = jax.block_until_ready(mod(x3))   # -> (1, 4, 16, 16)
    y4 = jax.block_until_ready(mod(x4))   # -> (2, 4, 16, 16)
    y5 = jax.block_until_ready(mod(x5))   # -> (1, 3, 32, 128)
    y6 = jax.block_until_ready(mod(x6))   # -> (1, 4, 40, 128)

    assert y2.shape == (1, 1, 16, 16)
    assert y3.shape == (1, 4, 16, 16)
    assert y4.shape == (2, 4, 16, 16)
    assert y5.shape == (1, 3, 32, 128)
    assert y6.shape == (1, 4, 40, 128)
    assert y4.dtype == x4.dtype

    # Exact checks (pure data movement) against the XLA reference permute.
    assert jnp.array_equal(y2[0, 0], x2)
    assert jnp.array_equal(y3[0], jnp.transpose(x3, (2, 0, 1)))
    assert jnp.array_equal(y4, jnp.transpose(x4, (0, 3, 1, 2)))
    assert jnp.array_equal(y5, jnp.transpose(x5, (0, 3, 1, 2)))
    assert jnp.array_equal(y6, jnp.transpose(x6, (0, 3, 1, 2)))

    # keepdim=True path (default of the free function).
    y3k = jax.block_until_ready(image_to_tensor(x3, keepdim=True))
    assert y3k.shape == (4, 16, 16)
    assert jnp.array_equal(y3k, jnp.transpose(x3, (2, 0, 1)))

    print("KERNEL_OK")
</pallas_src>

<mosaic_0001>
module attributes {stable_mosaic.version = 11 : i64} {
  func.func @_deinterleave_kernel(%arg0: i32, %arg1: i32, %arg2: memref<1x2x512xf32, #tpu.memory_space<vmem>>, %arg3: memref<1x4x2x128xf32, #tpu.memory_space<vmem>>, %arg4: memref<512x2xf32, #tpu.memory_space<vmem>>) attributes {dimension_semantics = [#tpu.dimension_semantics<parallel>, #tpu.dimension_semantics<parallel>], iteration_bounds = array<i64: 1, 1>, scalar_prefetch = 0 : i64, scratch_operands = 1 : i64, tpu.core_type = #tpu.core_type<tc>, window_params = [{transform_indices = @transform_0, window_bounds = array<i64: 1, 2, 512>}, {transform_indices = @transform_1, window_bounds = array<i64: 1, 4, 2, 128>}]} {
    %c0 = arith.constant 0 : index
    %c0_0 = arith.constant 0 : index
    %c0_1 = arith.constant 0 : index
    %0 = vector.load %arg2[%c0, %c0_0, %c0_1] : memref<1x2x512xf32, #tpu.memory_space<vmem>>, vector<1x2x512xf32>
    %1 = vector.shape_cast %0 : vector<1x2x512xf32> to vector<2x512xf32>
    %2 = tpu.transpose %1, [1, 0] : vector<2x512xf32> -> vector<512x2xf32>
    %c0_2 = arith.constant 0 : index
    %c0_3 = arith.constant 0 : index
    %3 = vector.load %arg4[%c0_2, %c0_3] : memref<512x2xf32, #tpu.memory_space<vmem>>, vector<512x2xf32>
    tpu.vector_store %arg4[%c0_2, %c0_3], %2 {strides = array<i32>} : memref<512x2xf32, #tpu.memory_space<vmem>>, vector<512x2xf32>,
    %c0_4 = arith.constant 0 : index
    %c0_5 = arith.constant 0 : index
    %4 = tpu.strided_load %arg4[%c0_4, %c0_5] {strides = array<i32: 4, 1>} : memref<512x2xf32, #tpu.memory_space<vmem>>, vector<128x2xf32>
    %5 = tpu.transpose %4, [1, 0] : vector<128x2xf32> -> vector<2x128xf32>
    %c0_6 = arith.constant 0 : index
    %c0_7 = arith.constant 0 : index
    %c0_8 = arith.constant 0 : index
    %c0_9 = arith.constant 0 : index
    %6 = vector.load %arg3[%c0_6, %c0_7, %c0_8, %c0_9] : memref<1x4x2x128xf32, #tpu.memory_space<vmem>>, vector<1x1x2x128xf32>
    %7 = vector.shape_cast %6 : vector<1x1x2x128xf32> to vector<2x128xf32>
    %8 = vector.shape_cast %5 : vector<2x128xf32> to vector<1x1x2x128xf32>
    tpu.vector_store %arg3[%c0_6, %c0_7, %c0_8, %c0_9], %8 {strides = array<i32>} : memref<1x4x2x128xf32, #tpu.memory_space<vmem>>, vector<1x1x2x128xf32>,
    %c1 = arith.constant 1 : index
    %c0_10 = arith.constant 0 : index
    %9 = tpu.strided_load %arg4[%c1, %c0_10] {strides = array<i32: 4, 1>} : memref<512x2xf32, #tpu.memory_space<vmem>>, vector<128x2xf32>
    %10 = tpu.transpose %9, [1, 0] : vector<128x2xf32> -> vector<2x128xf32>
    %c0_11 = arith.constant 0 : index
    %c1_12 = arith.constant 1 : index
    %c0_13 = arith.constant 0 : index
    %c0_14 = arith.constant 0 : index
    %11 = vector.load %arg3[%c0_11, %c1_12, %c0_13, %c0_14] : memref<1x4x2x128xf32, #tpu.memory_space<vmem>>, vector<1x1x2x128xf32>
    %12 = vector.shape_cast %11 : vector<1x1x2x128xf32> to vector<2x128xf32>
    %13 = vector.shape_cast %10 : vector<2x128xf32> to vector<1x1x2x128xf32>
    tpu.vector_store %arg3[%c0_11, %c1_12, %c0_13, %c0_14], %13 {strides = array<i32>} : memref<1x4x2x128xf32, #tpu.memory_space<vmem>>, vector<1x1x2x128xf32>,
    %c2 = arith.constant 2 : index
    %c0_15 = arith.constant 0 : index
    %14 = tpu.strided_load %arg4[%c2, %c0_15] {strides = array<i32: 4, 1>} : memref<512x2xf32, #tpu.memory_space<vmem>>, vector<128x2xf32>
    %15 = tpu.transpose %14, [1, 0] : vector<128x2xf32> -> vector<2x128xf32>
    %c0_16 = arith.constant 0 : index
    %c2_17 = arith.constant 2 : index
    %c0_18 = arith.constant 0 : index
    %c0_19 = arith.constant 0 : index
    %16 = vector.load %arg3[%c0_16, %c2_17, %c0_18, %c0_19] : memref<1x4x2x128xf32, #tpu.memory_space<vmem>>, vector<1x1x2x128xf32>
    %17 = vector.shape_cast %16 : vector<1x1x2x128xf32> to vector<2x128xf32>
    %18 = vector.shape_cast %15 : vector<2x128xf32> to vector<1x1x2x128xf32>
    tpu.vector_store %arg3[%c0_16, %c2_17, %c0_18, %c0_19], %18 {strides = array<i32>} : memref<1x4x2x128xf32, #tpu.memory_space<vmem>>, vector<1x1x2x128xf32>,
    %c3 = arith.constant 3 : index
    %c0_20 = arith.constant 0 : index
    %19 = tpu.strided_load %arg4[%c3, %c0_20] {strides = array<i32: 4, 1>} : memref<512x2xf32, #tpu.memory_space<vmem>>, vector<128x2xf32>
    %20 = tpu.transpose %19, [1, 0] : vector<128x2xf32> -> vector<2x128xf32>
    %c0_21 = arith.constant 0 : index
    %c3_22 = arith.constant 3 : index
    %c0_23 = arith.constant 0 : index
    %c0_24 = arith.constant 0 : index
    %21 = vector.load %arg3[%c0_21, %c3_22, %c0_23, %c0_24] : memref<1x4x2x128xf32, #tpu.memory_space<vmem>>, vector<1x1x2x128xf32>
    %22 = vector.shape_cast %21 : vector<1x1x2x128xf32> to vector<2x128xf32>
    %23 = vector.shape_cast %20 : vector<2x128xf32> to vector<1x1x2x128xf32>
    tpu.vector_store %arg3[%c0_21, %c3_22, %c0_23, %c0_24], %23 {strides = array<i32>} : memref<1x4x2x128xf32, #tpu.memory_space<vmem>>, vector<1x1x2x128xf32>,
    return
  }
  func.func @transform_0(%arg0: i32, %arg1: i32) -> (i32, i32, i32) {
    %c0_i32 = arith.constant 0 : i32
    %c0_i32_0 = arith.constant 0 : i32
    return %arg0, %arg1, %c0_i32 : i32, i32, i32
  }
  func.func @transform_1(%arg0: i32, %arg1: i32) -> (i32, i32, i32, i32) {
    %c0_i32 = arith.constant 0 : i32
    %c0_i32_0 = arith.constant 0 : i32
    %c0_i32_1 = arith.constant 0 : i32
    return %arg0, %c0_i32, %arg1, %c0_i32_0 : i32, i32, i32, i32
  }
}

</mosaic_0001>

<llo_original>
// kernel: tpu_custom_call.1
$region0: #{tpu_custom_call.1}
  #allocation0 [shape = 'u32[]', space=smem, size = 0x4, offset = 0x4, fixed_abs, tag = 'smem constant byte address 0x4 - core index']
  #allocation1 [shape = 'u32[72,128]{1,0:T(1,128)}', space=vmem, size = 0x9000, scoped, tag = 'internal scratch']
  #allocation2 [shape = 'f32[512,2]{1,0:T(8,128)}', space=vmem, size = 0x40000, scoped, tag = 'scratch operand']
  %s0 = inlined_call_operand.hbm [shape: f32[1,2,512], index: 0, kind: input, shape index: {}]
  %s1 = inlined_call_operand.hbm [shape: f32[1,4,2,128], index: 1, kind: output, shape index: {}]
  %s2 = sld [smem:[#allocation0]]
  $region18: #{tpu_custom_call.1} parent=0
    _
  %s4 = ssub.s32 1, %s2
  %s5 = scalar_select 0, %s4, %s2
  $region1: #{tpu_custom_call.1} parent=0
    #allocation3 [shape = 'u8[4096]{0}', space=vmem, size = 0x1000, scoped, tag = 'input window, operand 0, single buffered']
    #allocation4 [shape = 's32[1]{0}', space=sflag, size = 0x4, scoped, tag = 'scoped memory for tpu_custom_call.1']
    #allocation5 [shape = 's32[1]{0}', space=sflag, size = 0x4, scoped, tag = 'scoped memory for tpu_custom_call.1']
    #allocation6 [shape = 'u8[4096]{0}', space=vmem, size = 0x1000, scoped, tag = 'output window, operand 0, single buffered']
    %6 = vsyncpa [#allocation4], 0
    %7 = vsyncpa [#allocation5], 0
    // Predicated region
    $region2: #{tpu_custom_call.1} parent=1 // pred_check
      _
    $region3: #{tpu_custom_call.1} parent=1 // pred_check_branch
      %9 = sbr.rel (0) target = $region5
    $region4: #{tpu_custom_call.1} parent=1 // pred_region
      %11 = vsyncadd [#allocation4], 0
      %s13 = sshll.u32 %s0, 4
      %s14 = int_to_ptr.hbm [resolvable:$true] %s13
      %s15 = sshll.u32 [#allocation3], 4
      %s16 = int_to_ptr.vmem [resolvable:$true] %s15
      %18 = dma.hbm_to_vmem [thread:$0]  %s14, 128, %s16, [#allocation4]
    $region5: #{tpu_custom_call.1} parent=1 // pred_fallthru
      _
    // Predicated region
    $region6: #{tpu_custom_call.1} parent=1 // pred_check
      _
    $region7: #{tpu_custom_call.1} parent=1 // pred_check_branch
      %20 = sbr.rel (0) target = $region9
    $region8: #{tpu_custom_call.1} parent=1 // pred_region
      %22 = dma.done [#allocation4], 128
    $region9: #{tpu_custom_call.1} parent=1 // pred_fallthru
      _
    %v23 = vld [vmem:[#allocation3] sm:$0xff]
    %25 = vst [vmem:[#allocation1] ss:$4 sm:$0xff] %v23
    %v26 = vld.sshfl [vmem:[#allocation1] sm:$0xff pattern:$0x73625140]
    %v27 = vld.sshfl [vmem:[#allocation1 + $0x8] sm:$0xff pattern:$0x73625140]
    %v28 = vld.sshfl [vmem:[#allocation1 + $0x10] sm:$0xff pattern:$0x73625140]
    %v29 = vld.sshfl [vmem:[#allocation1 + $0x18] sm:$0xff pattern:$0x73625140]
    %34 = vxpose.xlu0.b32.start [1/16] %v26, 128
    %35 = vxpose.xlu0.b32.cont [2/16] 0.0, 128
    %36 = vxpose.xlu0.b32.cont [3/16] 0.0, 128
    %37 = vxpose.xlu0.b32.cont [4/16] 0.0, 128
    %38 = vxpose.xlu0.b32.cont [5/16] 0.0, 128
    %39 = vxpose.xlu0.b32.cont [6/16] 0.0, 128
    %40 = vxpose.xlu0.b32.cont [7/16] 0.0, 128
    %41 = vxpose.xlu0.b32.cont [8/16] 0.0, 128
    %42 = vxpose.xlu0.b32.cont [9/16] 0.0, 128
    %43 = vxpose.xlu0.b32.cont [10/16] 0.0, 128
    %44 = vxpose.xlu0.b32.cont [11/16] 0.0, 128
    %45 = vxpose.xlu0.b32.cont [12/16] 0.0, 128
    %46 = vxpose.xlu0.b32.cont [13/16] 0.0, 128
    %47 = vxpose.xlu0.b32.cont [14/16] 0.0, 128
    %48 = vxpose.xlu0.b32.cont [15/16] 0.0, 128
    %49 = vxpose.xlu0.b32.end [16/16] 0.0, 128
    %v50 = vpop.trf.xlu0
    %v51 = vpop.trf.xlu0
    %v52 = vpop.trf.xlu0
    %v53 = vpop.trf.xlu0
    %v54 = vpop.trf.xlu0
    %v55 = vpop.trf.xlu0
    %v56 = vpop.trf.xlu0
    %v57 = vpop.trf.xlu0
    %v58 = vpop.trf.xlu0
    %v59 = vpop.trf.xlu0
    %v60 = vpop.trf.xlu0
    %v61 = vpop.trf.xlu0
    %v62 = vpop.trf.xlu0
    %v63 = vpop.trf.xlu0
    %v64 = vpop.trf.xlu0
    %v65 = vpop.trf.xlu0
    %66 = vxpose.xlu0.b32.start [1/16] %v27, 128
    %67 = vxpose.xlu0.b32.cont [2/16] 0.0, 128
    %68 = vxpose.xlu0.b32.cont [3/16] 0.0, 128
    %69 = vxpose.xlu0.b32.cont [4/16] 0.0, 128
    %70 = vxpose.xlu0.b32.cont [5/16] 0.0, 128
    %71 = vxpose.xlu0.b32.cont [6/16] 0.0, 128
    %72 = vxpose.xlu0.b32.cont [7/16] 0.0, 128
    %73 = vxpose.xlu0.b32.cont [8/16] 0.0, 128
    %74 = vxpose.xlu0.b32.cont [9/16] 0.0, 128
    %75 = vxpose.xlu0.b32.cont [10/16] 0.0, 128
    %76 = vxpose.xlu0.b32.cont [11/16] 0.0, 128
    %77 = vxpose.xlu0.b32.cont [12/16] 0.0, 128
    %78 = vxpose.xlu0.b32.cont [13/16] 0.0, 128
    %79 = vxpose.xlu0.b32.cont [14/16] 0.0, 128
    %80 = vxpose.xlu0.b32.cont [15/16] 0.0, 128
    %81 = vxpose.xlu0.b32.end [16/16] 0.0, 128
    %v82 = vpop.trf.xlu0
    %v83 = vpop.trf.xlu0
    %v84 = vpop.trf.xlu0
    %v85 = vpop.trf.xlu0
    %v86 = vpop.trf.xlu0
    %v87 = vpop.trf.xlu0
    %v88 = vpop.trf.xlu0
    %v89 = vpop.trf.xlu0
    %v90 = vpop.trf.xlu0
    %v91 = vpop.trf.xlu0
    %v92 = vpop.trf.xlu0
    %v93 = vpop.trf.xlu0
    %v94 = vpop.trf.xlu0
    %v95 = vpop.trf.xlu0
    %v96 = vpop.trf.xlu0
    %v97 = vpop.trf.xlu0
    %98 = vxpose.xlu0.b32.start [1/16] %v28, 128
    %99 = vxpose.xlu0.b32.cont [2/16] 0.0, 128
    %100 = vxpose.xlu0.b32.cont [3/16] 0.0, 128
    %101 = vxpose.xlu0.b32.cont [4/16] 0.0, 128
    %102 = vxpose.xlu0.b32.cont [5/16] 0.0, 128
    %103 = vxpose.xlu0.b32.cont [6/16] 0.0, 128
    %104 = vxpose.xlu0.b32.cont [7/16] 0.0, 128
    %105 = vxpose.xlu0.b32.cont [8/16] 0.0, 128
    %106 = vxpose.xlu0.b32.cont [9/16] 0.0, 128
    %107 = vxpose.xlu0.b32.cont [10/16] 0.0, 128
    %108 = vxpose.xlu0.b32.cont [11/16] 0.0, 128
    %109 = vxpose.xlu0.b32.cont [12/16] 0.0, 128
    %110 = vxpose.xlu0.b32.cont [13/16] 0.0, 128
    %111 = vxpose.xlu0.b32.cont [14/16] 0.0, 128
    %112 = vxpose.xlu0.b32.cont [15/16] 0.0, 128
    %113 = vxpose.xlu0.b32.end [16/16] 0.0, 128
    %v114 = vpop.trf.xlu0
    %v115 = vpop.trf.xlu0
    %v116 = vpop.trf.xlu0
    %v117 = vpop.trf.xlu0
    %v118 = vpop.trf.xlu0
    %v119 = vpop.trf.xlu0
    %v120 = vpop.trf.xlu0
    %v121 = vpop.trf.xlu0
    %v122 = vpop.trf.xlu0
    %v123 = vpop.trf.xlu0
    %v124 = vpop.trf.xlu0
    %v125 = vpop.trf.xlu0
    %v126 = vpop.trf.xlu0
    %v127 = vpop.trf.xlu0
    %v128 = vpop.trf.xlu0
    %v129 = vpop.trf.xlu0
    %130 = vxpose.xlu0.b32.start [1/16] %v29, 128
    %131 = vxpose.xlu0.b32.cont [2/16] 0.0, 128
    %132 = vxpose.xlu0.b32.cont [3/16] 0.0, 128
    %133 = vxpose.xlu0.b32.cont [4/16] 0.0, 128
    %134 = vxpose.xlu0.b32.cont [5/16] 0.0, 128
    %135 = vxpose.xlu0.b32.cont [6/16] 0.0, 128
    %136 = vxpose.xlu0.b32.cont [7/16] 0.0, 128
    %137 = vxpose.xlu0.b32.cont [8/16] 0.0, 128
    %138 = vxpose.xlu0.b32.cont [9/16] 0.0, 128
    %139 = vxpose.xlu0.b32.cont [10/16] 0.0, 128
    %140 = vxpose.xlu0.b32.cont [11/16] 0.0, 128
    %141 = vxpose.xlu0.b32.cont [12/16] 0.0, 128
    %142 = vxpose.xlu0.b32.cont [13/16] 0.0, 128
    %143 = vxpose.xlu0.b32.cont [14/16] 0.0, 128
    %144 = vxpose.xlu0.b32.cont [15/16] 0.0, 128
    %145 = vxpose.xlu0.b32.end [16/16] 0.0, 128
    %v146 = vpop.trf.xlu0
    %v147 = vpop.trf.xlu0
    %v148 = vpop.trf.xlu0
    %v149 = vpop.trf.xlu0
    %v150 = vpop.trf.xlu0
    %v151 = vpop.trf.xlu0
    %v152 = vpop.trf.xlu0
    %v153 = vpop.trf.xlu0
    %v154 = vpop.trf.xlu0
    %v155 = vpop.trf.xlu0
    %v156 = vpop.trf.xlu0
    %v157 = vpop.trf.xlu0
    %v158 = vpop.trf.xlu0
    %v159 = vpop.trf.xlu0
    %v160 = vpop.trf.xlu0
    %v161 = vpop.trf.xlu0
    %vm162 = vcmask 15360
    %163 = vst.msk [vmem:[#allocation2] sm:$0xff] %vm162, %v50
    %164 = vst.msk [vmem:[#allocation2 + $0x8] sm:$0xff] %vm162, %v51
    %165 = vst.msk [vmem:[#allocation2 + $0x10] sm:$0xff] %vm162, %v52
    %166 = vst.msk [vmem:[#allocation2 + $0x18] sm:$0xff] %vm162, %v53
    %167 = vst.msk [vmem:[#allocation2 + $0x20] sm:$0xff] %vm162, %v54
    %168 = vst.msk [vmem:[#allocation2 + $0x28] sm:$0xff] %vm162, %v55
    %169 = vst.msk [vmem:[#allocation2 + $0x30] sm:$0xff] %vm162, %v56
    %170 = vst.msk [vmem:[#allocation2 + $0x38] sm:$0xff] %vm162, %v57
    %171 = vst.msk [vmem:[#allocation2 + $0x40] sm:$0xff] %vm162, %v58
    %172 = vst.msk [vmem:[#allocation2 + $0x48] sm:$0xff] %vm162, %v59
    %173 = vst.msk [vmem:[#allocation2 + $0x50] sm:$0xff] %vm162, %v60
    %174 = vst.msk [vmem:[#allocation2 + $0x58] sm:$0xff] %vm162, %v61
    %175 = vst.msk [vmem:[#allocation2 + $0x60] sm:$0xff] %vm162, %v62
    %176 = vst.msk [vmem:[#allocation2 + $0x68] sm:$0xff] %vm162, %v63
    %177 = vst.msk [vmem:[#allocation2 + $0x70] sm:$0xff] %vm162, %v64
    %178 = vst.msk [vmem:[#allocation2 + $0x78] sm:$0xff] %vm162, %v65
    %179 = vst.msk [vmem:[#allocation2 + $0x80] sm:$0xff] %vm162, %v82
    %180 = vst.msk [vmem:[#allocation2 + $0x88] sm:$0xff] %vm162, %v83
    %181 = vst.msk [vmem:[#allocation2 + $0x90] sm:$0xff] %vm162, %v84
    %182 = vst.msk [vmem:[#allocation2 + $0x98] sm:$0xff] %vm162, %v85
    %183 = vst.msk [vmem:[#allocation2 + $0xa0] sm:$0xff] %vm162, %v86
    %184 = vst.msk [vmem:[#allocation2 + $0xa8] sm:$0xff] %vm162, %v87
    %185 = vst.msk [vmem:[#allocation2 + $0xb0] sm:$0xff] %vm162, %v88
    %186 = vst.msk [vmem:[#allocation2 + $0xb8] sm:$0xff] %vm162, %v89
    %187 = vst.msk [vmem:[#allocation2 + $0xc0] sm:$0xff] %vm162, %v90
    %188 = vst.msk [vmem:[#allocation2 + $0xc8] sm:$0xff] %vm162, %v91
    %189 = vst.msk [vmem:[#allocation2 + $0xd0] sm:$0xff] %vm162, %v92
    %190 = vst.msk [vmem:[#allocation2 + $0xd8] sm:$0xff] %vm162, %v93
    %191 = vst.msk [vmem:[#allocation2 + $0xe0] sm:$0xff] %vm162, %v94
    %192 = vst.msk [vmem:[#allocation2 + $0xe8] sm:$0xff] %vm162, %v95
    %193 = vst.msk [vmem:[#allocation2 + $0xf0] sm:$0xff] %vm162, %v96
    %194 = vst.msk [vmem:[#allocation2 + $0xf8] sm:$0xff] %vm162, %v97
    %195 = vst.msk [vmem:[#allocation2 + $0x100] sm:$0xff] %vm162, %v114
    %196 = vst.msk [vmem:[#allocation2 + $0x108] sm:$0xff] %vm162, %v115
    %197 = vst.msk [vmem:[#allocation2 + $0x110] sm:$0xff] %vm162, %v116
    %198 = vst.msk [vmem:[#allocation2 + $0x118] sm:$0xff] %vm162, %v117
    %199 = vst.msk [vmem:[#allocation2 + $0x120] sm:$0xff] %vm162, %v118
    %200 = vst.msk [vmem:[#allocation2 + $0x128] sm:$0xff] %vm162, %v119
    %201 = vst.msk [vmem:[#allocation2 + $0x130] sm:$0xff] %vm162, %v120
    %202 = vst.msk [vmem:[#allocation2 + $0x138] sm:$0xff] %vm162, %v121
    %203 = vst.msk [vmem:[#allocation2 + $0x140] sm:$0xff] %vm162, %v122
    %204 = vst.msk [vmem:[#allocation2 + $0x148] sm:$0xff] %vm162, %v123
    %205 = vst.msk [vmem:[#allocation2 + $0x150] sm:$0xff] %vm162, %v124
    %206 = vst.msk [vmem:[#allocation2 + $0x158] sm:$0xff] %vm162, %v125
    %207 = vst.msk [vmem:[#allocation2 + $0x160] sm:$0xff] %vm162, %v126
    %208 = vst.msk [vmem:[#allocation2 + $0x168] sm:$0xff] %vm162, %v127
    %209 = vst.msk [vmem:[#allocation2 + $0x170] sm:$0xff] %vm162, %v128
    %210 = vst.msk [vmem:[#allocation2 + $0x178] sm:$0xff] %vm162, %v129
    %211 = vst.msk [vmem:[#allocation2 + $0x180] sm:$0xff] %vm162, %v146
    %212 = vst.msk [vmem:[#allocation2 + $0x188] sm:$0xff] %vm162, %v147
    %213 = vst.msk [vmem:[#allocation2 + $0x190] sm:$0xff] %vm162, %v148
    %214 = vst.msk [vmem:[#allocation2 + $0x198] sm:$0xff] %vm162, %v149
    %215 = vst.msk [vmem:[#allocation2 + $0x1a0] sm:$0xff] %vm162, %v150
    %216 = vst.msk [vmem:[#allocation2 + $0x1a8] sm:$0xff] %vm162, %v151
    %217 = vst.msk [vmem:[#allocation2 + $0x1b0] sm:$0xff] %vm162, %v152
    %218 = vst.msk [vmem:[#allocation2 + $0x1b8] sm:$0xff] %vm162, %v153
    %219 = vst.msk [vmem:[#allocation2 + $0x1c0] sm:$0xff] %vm162, %v154
    %220 = vst.msk [vmem:[#allocation2 + $0x1c8] sm:$0xff] %vm162, %v155
    %221 = vst.msk [vmem:[#allocation2 + $0x1d0] sm:$0xff] %vm162, %v156
    %222 = vst.msk [vmem:[#allocation2 + $0x1d8] sm:$0xff] %vm162, %v157
    %223 = vst.msk [vmem:[#allocation2 + $0x1e0] sm:$0xff] %vm162, %v158
    %224 = vst.msk [vmem:[#allocation2 + $0x1e8] sm:$0xff] %vm162, %v159
    %225 = vst.msk [vmem:[#allocation2 + $0x1f0] sm:$0xff] %vm162, %v160
    %226 = vst.msk [vmem:[#allocation2 + $0x1f8] sm:$0xff] %vm162, %v161
    %v227 = vld [vmem:[#allocation2] ss:$4 sm:$0xff]
    %s228 = scalar_lea.vmem [#allocation2], 32
    %v229 = vld [vmem:[%s228] ss:$4 sm:$0xff]
    %s230 = scalar_lea.vmem [#allocation2], 64
    %v231 = vld [vmem:[%s230] ss:$4 sm:$0xff]
    %s232 = scalar_lea.vmem [#allocation2], 96
    %v233 = vld [vmem:[%s232] ss:$4 sm:$0xff]
    %s234 = scalar_lea.vmem [#allocation2], 128
    %v235 = vld [vmem:[%s234] ss:$4 sm:$0xff]
    %s236 = scalar_lea.vmem [#allocation2], 160
    %v237 = vld [vmem:[%s236] ss:$4 sm:$0xff]
    %s238 = scalar_lea.vmem [#allocation2], 192
    %v239 = vld [vmem:[%s238] ss:$4 sm:$0xff]
    %s240 = scalar_lea.vmem [#allocation2], 224
    %v241 = vld [vmem:[%s240] ss:$4 sm:$0xff]
    %s242 = scalar_lea.vmem [#allocation2], 256
    %v243 = vld [vmem:[%s242] ss:$4 sm:$0xff]
    %s244 = scalar_lea.vmem [#allocation2], 288
    %v245 = vld [vmem:[%s244] ss:$4 sm:$0xff]
    %s246 = scalar_lea.vmem [#allocation2], 320
    %v247 = vld [vmem:[%s246] ss:$4 sm:$0xff]
    %s248 = scalar_lea.vmem [#allocation2], 352
    %v249 = vld [vmem:[%s248] ss:$4 sm:$0xff]
    %s250 = scalar_lea.vmem [#allocation2], 384
    %v251 = vld [vmem:[%s250] ss:$4 sm:$0xff]
    %s252 = scalar_lea.vmem [#allocation2], 416
    %v253 = vld [vmem:[%s252] ss:$4 sm:$0xff]
    %s254 = scalar_lea.vmem [#allocation2], 448
    %v255 = vld [vmem:[%s254] ss:$4 sm:$0xff]
    %s256 = scalar_lea.vmem [#allocation2], 480
    %v257 = vld [vmem:[%s256] ss:$4 sm:$0xff]
    %258 = vxpose.xlu0.b32.start [1/16] %v227, 128
    %259 = vxpose.xlu0.b32.cont [2/16] %v229, 128
    %260 = vxpose.xlu0.b32.cont [3/16] %v231, 128
    %261 = vxpose.xlu0.b32.cont [4/16] %v233, 128
    %262 = vxpose.xlu0.b32.cont [5/16] %v235, 128
    %263 = vxpose.xlu0.b32.cont [6/16] %v237, 128
    %264 = vxpose.xlu0.b32.cont [7/16] %v239, 128
    %265 = vxpose.xlu0.b32.cont [8/16] %v241, 128
    %266 = vxpose.xlu0.b32.cont [9/16] %v243, 128
    %267 = vxpose.xlu0.b32.cont [10/16] %v245, 128
    %268 = vxpose.xlu0.b32.cont [11/16] %v247, 128
    %269 = vxpose.xlu0.b32.cont [12/16] %v249, 128
    %270 = vxpose.xlu0.b32.cont [13/16] %v251, 128
    %271 = vxpose.xlu0.b32.cont [14/16] %v253, 128
    %272 = vxpose.xlu0.b32.cont [15/16] %v255, 128
    %273 = vxpose.xlu0.b32.end [16/16] %v257, 128
    %v274 = vpop.trf.xlu0
    %v275 = vpop.trf.xlu0
    %v276 = vpop.trf.xlu0
    %v277 = vpop.trf.xlu0
    %v278 = vpop.trf.xlu0
    %v279 = vpop.trf.xlu0
    %v280 = vpop.trf.xlu0
    %v281 = vpop.trf.xlu0
    %v282 = vpop.trf.xlu0
    %v283 = vpop.trf.xlu0
    %v284 = vpop.trf.xlu0
    %v285 = vpop.trf.xlu0
    %v286 = vpop.trf.xlu0
    %v287 = vpop.trf.xlu0
    %v288 = vpop.trf.xlu0
    %v289 = vpop.trf.xlu0
    %290 = vst [vmem:[#allocation6] sm:$0x3] %v274
    %s291 = scalar_lea.vmem [#allocation2], 1
    %v292 = vld [vmem:[%s291] ss:$4 sm:$0xff]
    %s293 = scalar_lea.vmem [#allocation2], 33
    %v294 = vld [vmem:[%s293] ss:$4 sm:$0xff]
    %s295 = scalar_lea.vmem [#allocation2], 65
    %v296 = vld [vmem:[%s295] ss:$4 sm:$0xff]
    %s297 = scalar_lea.vmem [#allocation2], 97
    %v298 = vld [vmem:[%s297] ss:$4 sm:$0xff]
    %s299 = scalar_lea.vmem [#allocation2], 129
    %v300 = vld [vmem:[%s299] ss:$4 sm:$0xff]
    %s301 = scalar_lea.vmem [#allocation2], 161
    %v302 = vld [vmem:[%s301] ss:$4 sm:$0xff]
    %s303 = scalar_lea.vmem [#allocation2], 193
    %v304 = vld [vmem:[%s303] ss:$4 sm:$0xff]
    %s305 = scalar_lea.vmem [#allocation2], 225
    %v306 = vld [vmem:[%s305] ss:$4 sm:$0xff]
    %s307 = scalar_lea.vmem [#allocation2], 257
    %v308 = vld [vmem:[%s307] ss:$4 sm:$0xff]
    %s309 = scalar_lea.vmem [#allocation2], 289
    %v310 = vld [vmem:[%s309] ss:$4 sm:$0xff]
    %s311 = scalar_lea.vmem [#allocation2], 321
    %v312 = vld [vmem:[%s311] ss:$4 sm:$0xff]
    %s313 = scalar_lea.vmem [#allocation2], 353
    %v314 = vld [vmem:[%s313] ss:$4 sm:$0xff]
    %s315 = scalar_lea.vmem [#allocation2], 385
    %v316 = vld [vmem:[%s315] ss:$4 sm:$0xff]
    %s317 = scalar_lea.vmem [#allocation2], 417
    %v318 = vld [vmem:[%s317] ss:$4 sm:$0xff]
    %s319 = scalar_lea.vmem [#allocation2], 449
    %v320 = vld [vmem:[%s319] ss:$4 sm:$0xff]
    %s321 = scalar_lea.vmem [#allocation2], 481
    %v322 = vld [vmem:[%s321] ss:$4 sm:$0xff]
    %323 = vxpose.xlu0.b32.start [1/16] %v292, 128
    %324 = vxpose.xlu0.b32.cont [2/16] %v294, 128
    %325 = vxpose.xlu0.b32.cont [3/16] %v296, 128
    %326 = vxpose.xlu0.b32.cont [4/16] %v298, 128
    %327 = vxpose.xlu0.b32.cont [5/16] %v300, 128
    %328 = vxpose.xlu0.b32.cont [6/16] %v302, 128
    %329 = vxpose.xlu0.b32.cont [7/16] %v304, 128
    %330 = vxpose.xlu0.b32.cont [8/16] %v306, 128
    %331 = vxpose.xlu0.b32.cont [9/16] %v308, 128
    %332 = vxpose.xlu0.b32.cont [10/16] %v310, 128
    %333 = vxpose.xlu0.b32.cont [11/16] %v312, 128
    %334 = vxpose.xlu0.b32.cont [12/16] %v314, 128
    %335 = vxpose.xlu0.b32.cont [13/16] %v316, 128
    %336 = vxpose.xlu0.b32.cont [14/16] %v318, 128
    %337 = vxpose.xlu0.b32.cont [15/16] %v320, 128
    %338 = vxpose.xlu0.b32.end [16/16] %v322, 128
    %v339 = vpop.trf.xlu0
    %v340 = vpop.trf.xlu0
    %v341 = vpop.trf.xlu0
    %v342 = vpop.trf.xlu0
    %v343 = vpop.trf.xlu0
    %v344 = vpop.trf.xlu0
    %v345 = vpop.trf.xlu0
    %v346 = vpop.trf.xlu0
    %v347 = vpop.trf.xlu0
    %v348 = vpop.trf.xlu0
    %v349 = vpop.trf.xlu0
    %v350 = vpop.trf.xlu0
    %v351 = vpop.trf.xlu0
    %v352 = vpop.trf.xlu0
    %v353 = vpop.trf.xlu0
    %v354 = vpop.trf.xlu0
    %s355 = scalar_lea.vmem [#allocation6], 2
    %356 = vst [vmem:[%s355] sm:$0x3] %v339
    %s357 = scalar_lea.vmem [#allocation2], 2
    %v358 = vld [vmem:[%s357] ss:$4 sm:$0xff]
    %s359 = scalar_lea.vmem [#allocation2], 34
    %v360 = vld [vmem:[%s359] ss:$4 sm:$0xff]
    %s361 = scalar_lea.vmem [#allocation2], 66
    %v362 = vld [vmem:[%s361] ss:$4 sm:$0xff]
    %s363 = scalar_lea.vmem [#allocation2], 98
    %v364 = vld [vmem:[%s363] ss:$4 sm:$0xff]
    %s365 = scalar_lea.vmem [#allocation2], 130
    %v366 = vld [vmem:[%s365] ss:$4 sm:$0xff]
    %s367 = scalar_lea.vmem [#allocation2], 162
    %v368 = vld [vmem:[%s367] ss:$4 sm:$0xff]
    %s369 = scalar_lea.vmem [#allocation2], 194
    %v370 = vld [vmem:[%s369] ss:$4 sm:$0xff]
    %s371 = scalar_lea.vmem [#allocation2], 226
    %v372 = vld [vmem:[%s371] ss:$4 sm:$0xff]
    %s373 = scalar_lea.vmem [#allocation2], 258
    %v374 = vld [vmem:[%s373] ss:$4 sm:$0xff]
    %s375 = scalar_lea.vmem [#allocation2], 290
    %v376 = vld [vmem:[%s375] ss:$4 sm:$0xff]
    %s377 = scalar_lea.vmem [#allocation2], 322
    %v378 = vld [vmem:[%s377] ss:$4 sm:$0xff]
    %s379 = scalar_lea.vmem [#allocation2], 354
    %v380 = vld [vmem:[%s379] ss:$4 sm:$0xff]
    %s381 = scalar_lea.vmem [#allocation2], 386
    %v382 = vld [vmem:[%s381] ss:$4 sm:$0xff]
    %s383 = scalar_lea.vmem [#allocation2], 418
    %v384 = vld [vmem:[%s383] ss:$4 sm:$0xff]
    %s385 = scalar_lea.vmem [#allocation2], 450
    %v386 = vld [vmem:[%s385] ss:$4 sm:$0xff]
    %s387 = scalar_lea.vmem [#allocation2], 482
    %v388 = vld [vmem:[%s387] ss:$4 sm:$0xff]
    %389 = vxpose.xlu0.b32.start [1/16] %v358, 128
    %390 = vxpose.xlu0.b32.cont [2/16] %v360, 128
    %391 = vxpose.xlu0.b32.cont [3/16] %v362, 128
    %392 = vxpose.xlu0.b32.cont [4/16] %v364, 128
    %393 = vxpose.xlu0.b32.cont [5/16] %v366, 128
    %394 = vxpose.xlu0.b32.cont [6/16] %v368, 128
    %395 = vxpose.xlu0.b32.cont [7/16] %v370, 128
    %396 = vxpose.xlu0.b32.cont [8/16] %v372, 128
    %397 = vxpose.xlu0.b32.cont [9/16] %v374, 128
    %398 = vxpose.xlu0.b32.cont [10/16] %v376, 128
    %399 = vxpose.xlu0.b32.cont [11/16] %v378, 128
    %400 = vxpose.xlu0.b32.cont [12/16] %v380, 128
    %401 = vxpose.xlu0.b32.cont [13/16] %v382, 128
    %402 = vxpose.xlu0.b32.cont [14/16] %v384, 128
    %403 = vxpose.xlu0.b32.cont [15/16] %v386, 128
    %404 = vxpose.xlu0.b32.end [16/16] %v388, 128
    %v405 = vpop.trf.xlu0
    %v406 = vpop.trf.xlu0
    %v407 = vpop.trf.xlu0
    %v408 = vpop.trf.xlu0
    %v409 = vpop.trf.xlu0
    %v410 = vpop.trf.xlu0
    %v411 = vpop.trf.xlu0
    %v412 = vpop.trf.xlu0
    %v413 = vpop.trf.xlu0
    %v414 = vpop.trf.xlu0
    %v415 = vpop.trf.xlu0
    %v416 = vpop.trf.xlu0
    %v417 = vpop.trf.xlu0
    %v418 = vpop.trf.xlu0
    %v419 = vpop.trf.xlu0
    %v420 = vpop.trf.xlu0
    %s421 = scalar_lea.vmem [#allocation6], 4
    %422 = vst [vmem:[%s421] sm:$0x3] %v405
    %s423 = scalar_lea.vmem [#allocation2], 3
    %v424 = vld [vmem:[%s423] ss:$4 sm:$0xff]
    %s425 = scalar_lea.vmem [#allocation2], 35
    %v426 = vld [vmem:[%s425] ss:$4 sm:$0xff]
    %s427 = scalar_lea.vmem [#allocation2], 67
    %v428 = vld [vmem:[%s427] ss:$4 sm:$0xff]
    %s429 = scalar_lea.vmem [#allocation2], 99
    %v430 = vld [vmem:[%s429] ss:$4 sm:$0xff]
    %s431 = scalar_lea.vmem [#allocation2], 131
    %v432 = vld [vmem:[%s431] ss:$4 sm:$0xff]
    %s433 = scalar_lea.vmem [#allocation2], 163
    %v434 = vld [vmem:[%s433] ss:$4 sm:$0xff]
    %s435 = scalar_lea.vmem [#allocation2], 195
    %v436 = vld [vmem:[%s435] ss:$4 sm:$0xff]
    %s437 = scalar_lea.vmem [#allocation2], 227
    %v438 = vld [vmem:[%s437] ss:$4 sm:$0xff]
    %s439 = scalar_lea.vmem [#allocation2], 259
    %v440 = vld [vmem:[%s439] ss:$4 sm:$0xff]
    %s441 = scalar_lea.vmem [#allocation2], 291
    %v442 = vld [vmem:[%s441] ss:$4 sm:$0xff]
    %s443 = scalar_lea.vmem [#allocation2], 323
    %v444 = vld [vmem:[%s443] ss:$4 sm:$0xff]
    %s445 = scalar_lea.vmem [#allocation2], 355
    %v446 = vld [vmem:[%s445] ss:$4 sm:$0xff]
    %s447 = scalar_lea.vmem [#allocation2], 387
    %v448 = vld [vmem:[%s447] ss:$4 sm:$0xff]
    %s449 = scalar_lea.vmem [#allocation2], 419
    %v450 = vld [vmem:[%s449] ss:$4 sm:$0xff]
    %s451 = scalar_lea.vmem [#allocation2], 451
    %v452 = vld [vmem:[%s451] ss:$4 sm:$0xff]
    %s453 = scalar_lea.vmem [#allocation2], 483
    %v454 = vld [vmem:[%s453] ss:$4 sm:$0xff]
    %455 = vxpose.xlu0.b32.start [1/16] %v424, 128
    %456 = vxpose.xlu0.b32.cont [2/16] %v426, 128
    %457 = vxpose.xlu0.b32.cont [3/16] %v428, 128
    %458 = vxpose.xlu0.b32.cont [4/16] %v430, 128
    %459 = vxpose.xlu0.b32.cont [5/16] %v432, 128
    %460 = vxpose.xlu0.b32.cont [6/16] %v434, 128
    %461 = vxpose.xlu0.b32.cont [7/16] %v436, 128
    %462 = vxpose.xlu0.b32.cont [8/16] %v438, 128
    %463 = vxpose.xlu0.b32.cont [9/16] %v440, 128
    %464 = vxpose.xlu0.b32.cont [10/16] %v442, 128
    %465 = vxpose.xlu0.b32.cont [11/16] %v444, 128
    %466 = vxpose.xlu0.b32.cont [12/16] %v446, 128
    %467 = vxpose.xlu0.b32.cont [13/16] %v448, 128
    %468 = vxpose.xlu0.b32.cont [14/16] %v450, 128
    %469 = vxpose.xlu0.b32.cont [15/16] %v452, 128
    %470 = vxpose.xlu0.b32.end [16/16] %v454, 128
    %v471 = vpop.trf.xlu0
    %v472 = vpop.trf.xlu0
    %v473 = vpop.trf.xlu0
    %v474 = vpop.trf.xlu0
    %v475 = vpop.trf.xlu0
    %v476 = vpop.trf.xlu0
    %v477 = vpop.trf.xlu0
    %v478 = vpop.trf.xlu0
    %v479 = vpop.trf.xlu0
    %v480 = vpop.trf.xlu0
    %v481 = vpop.trf.xlu0
    %v482 = vpop.trf.xlu0
    %v483 = vpop.trf.xlu0
    %v484 = vpop.trf.xlu0
    %v485 = vpop.trf.xlu0
    %v486 = vpop.trf.xlu0
    %s487 = scalar_lea.vmem [#allocation6], 6
    %488 = vst [vmem:[%s487] sm:$0x3] %v471
    // Predicated region
    $region10: #{tpu_custom_call.1} parent=1 // pred_check
      _
    $region11: #{tpu_custom_call.1} parent=1 // pred_check_branch
      %490 = sbr.rel (0) target = $region13
    $region12: #{tpu_custom_call.1} parent=1 // pred_region
      %492 = vsyncadd [#allocation5], 0
      %s493 = sshll.u32 [#allocation6], 4
      %s494 = int_to_ptr.vmem [resolvable:$true] %s493
      %s495 = sshll.u32 %s1, 4
      %s496 = int_to_ptr.hbm [resolvable:$true] %s495
      %501 = dma.vmem_to_hbm [thread:$0]  %s494, 128, %s496, [#allocation5], 32, 32, 2
    $region13: #{tpu_custom_call.1} parent=1 // pred_fallthru
      _
    // Predicated region
    $region14: #{tpu_custom_call.1} parent=1 // pred_check
      _
    $region15: #{tpu_custom_call.1} parent=1 // pred_check_branch
      %503 = sbr.rel (0) target = $region17
    $region16: #{tpu_custom_call.1} parent=1 // pred_region
      %505 = dma.done [#allocation5], 128
    $region17: #{tpu_custom_call.1} parent=1 // pred_fallthru
      _
    %506 = vsyncpa [#allocation4], 1
    %507 = vsyncpa [#allocation5], 1

</llo_original>
